<compile_context>
chip_gen: v7x
topology: tpu7x:2x2x1
jax: 0.10.0
libtpu: 0.0.40
codegen_flags: <defaults>
</compile_context>

<pallas_src>
import functools

import jax
import jax.numpy as jnp
from jax import lax
from jax.experimental import pallas as pl
from jax.experimental.pallas import tpu as pltpu

VMEM_SPEC = pl.BlockSpec(memory_space=pltpu.MemorySpace.VMEM)
SMEM_SPEC = pl.BlockSpec(memory_space=pltpu.MemorySpace.SMEM)

_LANES = 128


# ---------------------------------------------------------------------------
# Wrapper-side lane-dense repacking helpers (layout plumbing only, no math).
# ---------------------------------------------------------------------------
def _pad_lanes(x, fill=0):
    """Pad the last (lane) dim of a 2D array up to a multiple of 128."""
    _, l = x.shape
    pad = (-l) % _LANES
    if pad:
        x = jnp.pad(x, ((0, 0), (0, pad)), constant_values=fill)
    return x


def _to_lane_rows(x, fill=0.0):
    """Flatten to 1D, pad to a multiple of 128, reshape to (rows, 128)."""
    flat = jnp.reshape(x, (-1,))
    pad = (-flat.shape[0]) % _LANES
    if pad:
        flat = jnp.pad(flat, (0, pad), constant_values=fill)
    return flat.reshape(-1, _LANES)


# ---------------------------------------------------------------------------
# Fused kernel: focal + row-L1 + range-CE partial sums and the final scalar
# combine, all in one launch.  n_batch / n_range are static Python constants.
# ---------------------------------------------------------------------------
def _lane_loss_kernel(hm_pred_ref, hm_gt_ref, seg_ref, tpos_ref, mask_ref,
                      rng_ref, tgt_ref, out_ref, *, n_batch, n_range):
    # ---- CenterNet-style focal loss over the heatmap (lane-dense 2D) ------
    pred = hm_pred_ref[...]
    gt = hm_gt_ref[...]
    pos_b = gt == 1.0
    neg_b = gt < 1.0                       # faithful to torch's gt.lt(1)
    npos = jnp.sum(pos_b.astype(jnp.float32))
    one_m_pred = 1.0 - pred
    one_m_gt = 1.0 - gt
    neg_w = one_m_gt * one_m_gt
    neg_w = neg_w * neg_w                  # (1 - gt)^4 via two squarings
    pos_term = jnp.log(pred) * (one_m_pred * one_m_pred)
    neg_term = jnp.log(one_m_pred) * (pred * pred) * neg_w
    # where-guard: padded (pred=0, gt=0) heatmap entries contribute exactly 0
    # instead of 0 * inf = NaN; exact match to torch for pred in (0,1).
    pos_sum = jnp.sum(jnp.where(pos_b, pos_term, 0.0))
    neg_sum = jnp.sum(jnp.where(neg_b, neg_term, 0.0))

    # ---- softmax-over-W expected column position + masked L1 --------------
    seg = seg_ref[...]                                         # (W, M)
    m = jnp.max(seg, axis=0, keepdims=True)
    e = jnp.exp(seg - m)
    sm = e * pl.reciprocal(jnp.sum(e, axis=0, keepdims=True), approx=True)
    w_idx = lax.broadcasted_iota(jnp.int32, (seg.shape[0], 1), 0).astype(jnp.float32)
    row_pos = jnp.sum(w_idx * sm, axis=0, keepdims=True) + 0.5  # (1, M)
    msk = mask_ref[...]                                         # 0/1 mask
    abs_sum = jnp.sum(jnp.abs(row_pos - tpos_ref[...]) * msk)   # L1 'sum'
    mask_sum = jnp.sum(msk)

    # ---- CrossEntropy(softmax(range, dim=classes), targets) ---------------
    # The double softmax of the torch reference (softmax then CE's own
    # log_softmax) is reproduced exactly.
    x = rng_ref[...]                                            # (K, L)
    t = tgt_ref[...]                                            # (1, L), -1 = pad
    m1 = jnp.max(x, axis=0, keepdims=True)
    e1 = jnp.exp(x - m1)
    z = e1 * pl.reciprocal(jnp.sum(e1, axis=0, keepdims=True), approx=True)
    m2 = jnp.max(z, axis=0, keepdims=True)
    lse = jnp.log(jnp.sum(jnp.exp(z - m2), axis=0, keepdims=True)) + m2
    logp = z - lse
    cls = lax.broadcasted_iota(jnp.int32, z.shape, 0)
    onehot = (cls == t).astype(jnp.float32)     # pad target -1 -> all-zero column
    picked_sum = jnp.sum(logp * onehot)

    # ---- scalar combine (matches LaneLoss.forward exactly) -----------------
    vp_loss = jnp.where(npos != 0.0,
                        -(pos_sum / n_batch + neg_sum / n_batch),
                        jnp.float32(0.0))
    row_loss = abs_sum / (mask_sum + 0.0001)
    range_loss = -picked_sum / n_range
    out_ref[0, 0] = vp_loss + row_loss + range_loss


# ---------------------------------------------------------------------------
# Wrapper reproducing LaneLoss.forward.
# ---------------------------------------------------------------------------
def lane_loss(inputs_seg, inputs_range, inputs_hm,
              targets_pos, targets_range, targets_hm, mask,
              gamma=2, alpha=0.25):
    # gamma / alpha are stored by the torch module but unused in its forward.
    N, C, H, W = inputs_seg.shape
    Nr, K, Hr = inputs_range.shape
    f32 = jnp.float32

    # ---- lane-dense repacking (pad values chosen so pads contribute 0) -----
    hm_pred = _to_lane_rows(inputs_hm.astype(f32))              # pad pred = 0
    hm_gt = _to_lane_rows(targets_hm.astype(f32))               # pad gt   = 0
    seg_t = _pad_lanes(jnp.transpose(
        jnp.reshape(inputs_seg.astype(f32), (N * C * H, W))))   # (W, N*C*H)
    tpos_2d = _pad_lanes(jnp.reshape(targets_pos.astype(f32), (1, N * C * H)))
    mask_2d = _pad_lanes(jnp.reshape(mask.astype(f32), (1, N * C * H)))
    rng_t = _pad_lanes(jnp.reshape(
        jnp.transpose(inputs_range.astype(f32), (1, 0, 2)), (K, Nr * Hr)))
    tgt_2d = _pad_lanes(jnp.reshape(targets_range.astype(jnp.int32), (1, Nr * Hr)),
                        fill=-1)                                # -1 never matches

    kernel = functools.partial(_lane_loss_kernel,
                               n_batch=float(N), n_range=float(Nr * Hr))

    # Arrays are KB-scale: one grid-less block per input keeps everything
    # resident in VMEM and launches exactly once.
    # TODO(synk): for production-sized heatmaps add a grid over N*C (marked
    # "parallel" for megacore) with pl.when accumulator init/finalize and an
    # explicit vmem_limit_bytes.
    out = pl.pallas_call(
        kernel,
        out_shape=jax.ShapeDtypeStruct((1, 1), jnp.float32),
        in_specs=[VMEM_SPEC] * 7,
        out_specs=SMEM_SPEC,
    )(hm_pred, hm_gt, seg_t, tpos_2d, mask_2d, rng_t, tgt_2d)
    return out[0, 0]


if __name__ == "__main__":
    key = jax.random.PRNGKey(0)
    ks = jax.random.split(key, 7)

    N, C, H, W = 2, 4, 16, 16      # seg logits over W columns
    K = 4                          # range classes (CE class axis = dim 1)

    inputs_seg = jax.random.normal(ks[0], (N, C, H, W), jnp.float32)
    inputs_range = jax.random.normal(ks[1], (N, K, H), jnp.float32)
    # heatmap predictions in (0,1) (as in the torch usage, post-sigmoid)
    inputs_hm = jax.nn.sigmoid(jax.random.normal(ks[2], (N, 1, H, W), jnp.float32))

    targets_pos = jax.random.uniform(ks[3], (N, C, H), jnp.float32, 0.0, float(W))
    targets_range = jax.random.randint(ks[4], (N, H), 0, K, jnp.int32)
    targets_hm = jax.random.uniform(ks[5], (N, 1, H, W), jnp.float32, 0.0, 0.99)
    targets_hm = targets_hm.at[:, :, 4, 7].set(1.0)   # a few exact positives
    mask = (jax.random.uniform(ks[6], (N, C, H)) > 0.5).astype(jnp.float32)

    loss = jax.jit(lane_loss)(inputs_seg, inputs_range, inputs_hm,
                              targets_pos, targets_range, targets_hm, mask)
    jax.block_until_ready(loss)
    print("KERNEL_OK")
</pallas_src>

<mosaic_0001>
module attributes {stable_mosaic.version = 11 : i64} {
  func.func @_lane_loss_kernel(%arg0: memref<4x128xf32, #tpu.memory_space<vmem>>, %arg1: memref<4x128xf32, #tpu.memory_space<vmem>>, %arg2: memref<16x128xf32, #tpu.memory_space<vmem>>, %arg3: memref<1x128xf32, #tpu.memory_space<vmem>>, %arg4: memref<1x128xf32, #tpu.memory_space<vmem>>, %arg5: memref<4x128xf32, #tpu.memory_space<vmem>>, %arg6: memref<1x128xi32, #tpu.memory_space<vmem>>, %arg7: memref<1x1xf32, #tpu.memory_space<smem>>) attributes {dimension_semantics = [], scalar_prefetch = 0 : i64, scratch_operands = 0 : i64, tpu.core_type = #tpu.core_type<tc>} {
    %c0 = arith.constant 0 : index
    %c0_0 = arith.constant 0 : index
    %0 = vector.load %arg0[%c0, %c0_0] : memref<4x128xf32, #tpu.memory_space<vmem>>, vector<4x128xf32>
    %c0_1 = arith.constant 0 : index
    %c0_2 = arith.constant 0 : index
    %1 = vector.load %arg1[%c0_1, %c0_2] : memref<4x128xf32, #tpu.memory_space<vmem>>, vector<4x128xf32>
    %cst = arith.constant 1.000000e+00 : f32
    %2 = vector.broadcast %cst : f32 to vector<4x128xf32>
    %3 = arith.cmpf oeq, %1, %2 : vector<4x128xf32>
    %cst_3 = arith.constant 1.000000e+00 : f32
    %4 = vector.broadcast %cst_3 : f32 to vector<4x128xf32>
    %5 = arith.cmpf olt, %1, %4 : vector<4x128xf32>
    %6 = arith.extui %3 : vector<4x128xi1> to vector<4x128xi32>
    %7 = arith.sitofp %6 : vector<4x128xi32> to vector<4x128xf32>
    %8 = vector.shape_cast %7 : vector<4x128xf32> to vector<1x4x128xf32>
    %cst_4 = arith.constant dense<0.000000e+00> : vector<1xf32>
    %9 = vector.multi_reduction <add>, %8, %cst_4 [1, 2] : vector<1x4x128xf32> to vector<1xf32>
    %10 = vector.shape_cast %9 : vector<1xf32> to vector<1x1x1xf32>
    %11 = vector.extract %10[0, 0, 0] : f32 from vector<1x1x1xf32>
    %cst_5 = arith.constant 1.000000e+00 : f32
    %12 = vector.broadcast %cst_5 : f32 to vector<4x128xf32>
    %13 = arith.subf %12, %0 : vector<4x128xf32>
    %cst_6 = arith.constant 1.000000e+00 : f32
    %14 = vector.broadcast %cst_6 : f32 to vector<4x128xf32>
    %15 = arith.subf %14, %1 : vector<4x128xf32>
    %16 = arith.mulf %15, %15 : vector<4x128xf32>
    %17 = arith.mulf %16, %16 : vector<4x128xf32>
    %18 = math.log %0 : vector<4x128xf32>
    %19 = arith.mulf %13, %13 : vector<4x128xf32>
    %20 = arith.mulf %18, %19 : vector<4x128xf32>
    %21 = math.log %13 : vector<4x128xf32>
    %22 = arith.mulf %0, %0 : vector<4x128xf32>
    %23 = arith.mulf %21, %22 : vector<4x128xf32>
    %24 = arith.mulf %23, %17 : vector<4x128xf32>
    %cst_7 = arith.constant 0.000000e+00 : f32
    %25 = vector.broadcast %cst_7 : f32 to vector<4x128xf32>
    %26 = arith.select %3, %20, %25 : vector<4x128xi1>, vector<4x128xf32>
    %27 = vector.shape_cast %26 : vector<4x128xf32> to vector<1x4x128xf32>
    %cst_8 = arith.constant dense<0.000000e+00> : vector<1xf32>
    %28 = vector.multi_reduction <add>, %27, %cst_8 [1, 2] : vector<1x4x128xf32> to vector<1xf32>
    %29 = vector.shape_cast %28 : vector<1xf32> to vector<1x1x1xf32>
    %30 = vector.extract %29[0, 0, 0] : f32 from vector<1x1x1xf32>
    %cst_9 = arith.constant 0.000000e+00 : f32
    %31 = vector.broadcast %cst_9 : f32 to vector<4x128xf32>
    %32 = arith.select %5, %24, %31 : vector<4x128xi1>, vector<4x128xf32>
    %33 = vector.shape_cast %32 : vector<4x128xf32> to vector<1x4x128xf32>
    %cst_10 = arith.constant dense<0.000000e+00> : vector<1xf32>
    %34 = vector.multi_reduction <add>, %33, %cst_10 [1, 2] : vector<1x4x128xf32> to vector<1xf32>
    %35 = vector.shape_cast %34 : vector<1xf32> to vector<1x1x1xf32>
    %36 = vector.extract %35[0, 0, 0] : f32 from vector<1x1x1xf32>
    %c0_11 = arith.constant 0 : index
    %c0_12 = arith.constant 0 : index
    %37 = vector.load %arg2[%c0_11, %c0_12] : memref<16x128xf32, #tpu.memory_space<vmem>>, vector<16x128xf32>
    %cst_13 = arith.constant dense<0xFF800000> : vector<128xf32>
    %38 = vector.multi_reduction <maximumf>, %37, %cst_13 [0] : vector<16x128xf32> to vector<128xf32>
    %39 = vector.shape_cast %38 : vector<128xf32> to vector<1x128xf32>
    %40 = vector.broadcast %39 : vector<1x128xf32> to vector<16x128xf32>
    %41 = arith.subf %37, %40 : vector<16x128xf32>
    %42 = math.exp %41 : vector<16x128xf32>
    %cst_14 = arith.constant dense<0.000000e+00> : vector<128xf32>
    %43 = vector.multi_reduction <add>, %42, %cst_14 [0] : vector<16x128xf32> to vector<128xf32>
    %44 = vector.shape_cast %43 : vector<128xf32> to vector<1x128xf32>
    %45 = tpu.reciprocal %44 {approx = true} : vector<1x128xf32> -> vector<1x128xf32>
    %46 = vector.broadcast %45 : vector<1x128xf32> to vector<16x128xf32>
    %47 = arith.mulf %42, %46 : vector<16x128xf32>
    %48 = tpu.iota {dimensions = array<i32: 0>} : vector<16x1xi32>
    %49 = arith.sitofp %48 : vector<16x1xi32> to vector<16x1xf32>
    %50 = vector.broadcast %49 : vector<16x1xf32> to vector<16x128xf32>
    %51 = arith.mulf %50, %47 : vector<16x128xf32>
    %cst_15 = arith.constant dense<0.000000e+00> : vector<128xf32>
    %52 = vector.multi_reduction <add>, %51, %cst_15 [0] : vector<16x128xf32> to vector<128xf32>
    %53 = vector.shape_cast %52 : vector<128xf32> to vector<1x128xf32>
    %cst_16 = arith.constant 5.000000e-01 : f32
    %54 = vector.broadcast %cst_16 : f32 to vector<1x128xf32>
    %55 = arith.addf %53, %54 : vector<1x128xf32>
    %c0_17 = arith.constant 0 : index
    %c0_18 = arith.constant 0 : index
    %56 = vector.load %arg4[%c0_17, %c0_18] : memref<1x128xf32, #tpu.memory_space<vmem>>, vector<1x128xf32>
    %c0_19 = arith.constant 0 : index
    %c0_20 = arith.constant 0 : index
    %57 = vector.load %arg3[%c0_19, %c0_20] : memref<1x128xf32, #tpu.memory_space<vmem>>, vector<1x128xf32>
    %58 = arith.subf %55, %57 : vector<1x128xf32>
    %59 = math.absf %58 : vector<1x128xf32>
    %60 = arith.mulf %59, %56 : vector<1x128xf32>
    %61 = vector.shape_cast %60 : vector<1x128xf32> to vector<1x1x128xf32>
    %cst_21 = arith.constant dense<0.000000e+00> : vector<1xf32>
    %62 = vector.multi_reduction <add>, %61, %cst_21 [1, 2] : vector<1x1x128xf32> to vector<1xf32>
    %63 = vector.shape_cast %62 : vector<1xf32> to vector<1x1x1xf32>
    %64 = vector.extract %63[0, 0, 0] : f32 from vector<1x1x1xf32>
    %65 = vector.shape_cast %56 : vector<1x128xf32> to vector<1x1x128xf32>
    %cst_22 = arith.constant dense<0.000000e+00> : vector<1xf32>
    %66 = vector.multi_reduction <add>, %65, %cst_22 [1, 2] : vector<1x1x128xf32> to vector<1xf32>
    %67 = vector.shape_cast %66 : vector<1xf32> to vector<1x1x1xf32>
    %68 = vector.extract %67[0, 0, 0] : f32 from vector<1x1x1xf32>
    %c0_23 = arith.constant 0 : index
    %c0_24 = arith.constant 0 : index
    %69 = vector.load %arg5[%c0_23, %c0_24] : memref<4x128xf32, #tpu.memory_space<vmem>>, vector<4x128xf32>
    %c0_25 = arith.constant 0 : index
    %c0_26 = arith.constant 0 : index
    %70 = vector.load %arg6[%c0_25, %c0_26] : memref<1x128xi32, #tpu.memory_space<vmem>>, vector<1x128xi32>
    %cst_27 = arith.constant dense<0xFF800000> : vector<128xf32>
    %71 = vector.multi_reduction <maximumf>, %69, %cst_27 [0] : vector<4x128xf32> to vector<128xf32>
    %72 = vector.shape_cast %71 : vector<128xf32> to vector<1x128xf32>
    %73 = vector.broadcast %72 : vector<1x128xf32> to vector<4x128xf32>
    %74 = arith.subf %69, %73 : vector<4x128xf32>
    %75 = math.exp %74 : vector<4x128xf32>
    %cst_28 = arith.constant dense<0.000000e+00> : vector<128xf32>
    %76 = vector.multi_reduction <add>, %75, %cst_28 [0] : vector<4x128xf32> to vector<128xf32>
    %77 = vector.shape_cast %76 : vector<128xf32> to vector<1x128xf32>
    %78 = tpu.reciprocal %77 {approx = true} : vector<1x128xf32> -> vector<1x128xf32>
    %79 = vector.broadcast %78 : vector<1x128xf32> to vector<4x128xf32>
    %80 = arith.mulf %75, %79 : vector<4x128xf32>
    %cst_29 = arith.constant dense<0xFF800000> : vector<128xf32>
    %81 = vector.multi_reduction <maximumf>, %80, %cst_29 [0] : vector<4x128xf32> to vector<128xf32>
    %82 = vector.shape_cast %81 : vector<128xf32> to vector<1x128xf32>
    %83 = vector.broadcast %82 : vector<1x128xf32> to vector<4x128xf32>
    %84 = arith.subf %80, %83 : vector<4x128xf32>
    %85 = math.exp %84 : vector<4x128xf32>
    %cst_30 = arith.constant dense<0.000000e+00> : vector<128xf32>
    %86 = vector.multi_reduction <add>, %85, %cst_30 [0] : vector<4x128xf32> to vector<128xf32>
    %87 = vector.shape_cast %86 : vector<128xf32> to vector<1x128xf32>
    %88 = math.log %87 : vector<1x128xf32>
    %89 = arith.addf %88, %82 : vector<1x128xf32>
    %90 = vector.broadcast %89 : vector<1x128xf32> to vector<4x128xf32>
    %91 = arith.subf %80, %90 : vector<4x128xf32>
    %92 = tpu.iota {dimensions = array<i32: 0>} : vector<4x128xi32>
    %93 = vector.broadcast %70 : vector<1x128xi32> to vector<4x128xi32>
    %94 = arith.cmpi eq, %92, %93 : vector<4x128xi32>
    %95 = arith.extui %94 : vector<4x128xi1> to vector<4x128xi32>
    %96 = arith.sitofp %95 : vector<4x128xi32> to vector<4x128xf32>
    %97 = arith.mulf %91, %96 : vector<4x128xf32>
    %98 = vector.shape_cast %97 : vector<4x128xf32> to vector<1x4x128xf32>
    %cst_31 = arith.constant dense<0.000000e+00> : vector<1xf32>
    %99 = vector.multi_reduction <add>, %98, %cst_31 [1, 2] : vector<1x4x128xf32> to vector<1xf32>
    %100 = vector.shape_cast %99 : vector<1xf32> to vector<1x1x1xf32>
    %101 = vector.extract %100[0, 0, 0] : f32 from vector<1x1x1xf32>
    %cst_32 = arith.constant 0.000000e+00 : f32
    %102 = arith.cmpf one, %11, %cst_32 : f32
    %cst_33 = arith.constant 2.000000e+00 : f32
    %103 = arith.divf %30, %cst_33 : f32
    %cst_34 = arith.constant 2.000000e+00 : f32
    %104 = arith.divf %36, %cst_34 : f32
    %105 = arith.addf %103, %104 : f32
    %cst_35 = arith.constant 0.000000e+00 : f32
    %106 = arith.subf %cst_35, %105 : f32
    %cst_36 = arith.constant 0.000000e+00 : f32
    %107 = arith.select %102, %106, %cst_36 : f32
    %cst_37 = arith.constant 9.99999974E-5 : f32
    %108 = arith.addf %68, %cst_37 : f32
    %109 = arith.divf %64, %108 : f32
    %cst_38 = arith.constant 0.000000e+00 : f32
    %110 = arith.subf %cst_38, %101 : f32
    %cst_39 = arith.constant 3.200000e+01 : f32
    %111 = arith.divf %110, %cst_39 : f32
    %112 = arith.addf %107, %109 : f32
    %113 = arith.addf %112, %111 : f32
    %c0_40 = arith.constant 0 : index
    %c0_41 = arith.constant 0 : index
    %114 = memref.load %arg7[%c0_40, %c0_41] : memref<1x1xf32, #tpu.memory_space<smem>>
    memref.store %113, %arg7[%c0_40, %c0_41] : memref<1x1xf32, #tpu.memory_space<smem>>
    return
  }
}

</mosaic_0001>

<llo_original>
// kernel: lane_loss.1
$region0: #{lane_loss.1}
  #allocation0 [shape = 'u32[]', space=smem, size = 0x4, offset = 0x4, fixed_abs, tag = 'smem constant byte address 0x4 - core index']
  #allocation1 [shape = 'u32[144,128]{1,0:T(1,128)}', space=vmem, size = 0x12000, scoped, tag = 'internal scratch']
  %s0 = inlined_call_operand.vmem [shape: f32[4,128], index: 0, kind: input, shape index: {}]
  %s1 = inlined_call_operand.vmem [shape: f32[4,128], index: 1, kind: input, shape index: {}]
  %s2 = inlined_call_operand.vmem [shape: f32[16,128], index: 2, kind: input, shape index: {}]
  %s3 = inlined_call_operand.vmem [shape: f32[1,128], index: 3, kind: input, shape index: {}]
  %s4 = inlined_call_operand.vmem [shape: f32[1,128], index: 4, kind: input, shape index: {}]
  %s5 = inlined_call_operand.vmem [shape: f32[4,128], index: 5, kind: input, shape index: {}]
  %s6 = inlined_call_operand.vmem [shape: s32[1,128], index: 6, kind: input, shape index: {}]
  %s7 = inlined_call_operand.hbm [shape: f32[1,1], index: 7, kind: output, shape index: {}]
  %s8 = sld [smem:[#allocation0]]
  $region38: #{lane_loss.1} parent=0
    _
  %s10 = ssub.s32 1, %s8
  %s11 = scalar_select 0, %s10, %s8
  $region1: #{lane_loss.1} parent=0
    #allocation2 [shape = 'u8[512]{0}', space=smem, size = 0x200, scoped, tag = 'output window, operand 0, single buffered']
    #allocation3 [shape = 's32[1]{0}', space=sflag, size = 0x4, scoped, tag = 'scoped memory for lane_loss.1']
    %12 = vsyncpa [#allocation3], 0
    // Predicated region
    $region2: #{lane_loss.1} parent=1 // pred_check
      _
    $region3: #{lane_loss.1} parent=1 // pred_check_branch
      %14 = sbr.rel (0) target = $region5
    $region4: #{lane_loss.1} parent=1 // pred_region
      _
    $region5: #{lane_loss.1} parent=1 // pred_fallthru
      _
    // Predicated region
    $region6: #{lane_loss.1} parent=1 // pred_check
      _
    $region7: #{lane_loss.1} parent=1 // pred_check_branch
      %16 = sbr.rel (0) target = $region9
    $region8: #{lane_loss.1} parent=1 // pred_region
      _
    $region9: #{lane_loss.1} parent=1 // pred_fallthru
      _
    // Predicated region
    $region10: #{lane_loss.1} parent=1 // pred_check
      _
    $region11: #{lane_loss.1} parent=1 // pred_check_branch
      %18 = sbr.rel (0) target = $region13
    $region12: #{lane_loss.1} parent=1 // pred_region
      _
    $region13: #{lane_loss.1} parent=1 // pred_fallthru
      _
    // Predicated region
    $region14: #{lane_loss.1} parent=1 // pred_check
      _
    $region15: #{lane_loss.1} parent=1 // pred_check_branch
      %20 = sbr.rel (0) target = $region17
    $region16: #{lane_loss.1} parent=1 // pred_region
      _
    $region17: #{lane_loss.1} parent=1 // pred_fallthru
      _
    // Predicated region
    $region18: #{lane_loss.1} parent=1 // pred_check
      _
    $region19: #{lane_loss.1} parent=1 // pred_check_branch
      %22 = sbr.rel (0) target = $region21
    $region20: #{lane_loss.1} parent=1 // pred_region
      _
    $region21: #{lane_loss.1} parent=1 // pred_fallthru
      _
    // Predicated region
    $region22: #{lane_loss.1} parent=1 // pred_check
      _
    $region23: #{lane_loss.1} parent=1 // pred_check_branch
      %24 = sbr.rel (0) target = $region25
    $region24: #{lane_loss.1} parent=1 // pred_region
      _
    $region25: #{lane_loss.1} parent=1 // pred_fallthru
      _
    // Predicated region
    $region26: #{lane_loss.1} parent=1 // pred_check
      _
    $region27: #{lane_loss.1} parent=1 // pred_check_branch
      %26 = sbr.rel (0) target = $region29
    $region28: #{lane_loss.1} parent=1 // pred_region
      _
    $region29: #{lane_loss.1} parent=1 // pred_fallthru
      _
    %v27 = vld [vmem:[%s0] sm:$0xf]
    %v28 = vld [vmem:[%s1] sm:$0xf]
    %vm29 = vcmp.eq.f32.partialorder %v28, 1.0
    %vm30 = vcmp.lt.f32.partialorder %v28, 1.0
    %v31 = vsel %vm29, 1, 0
    %v32 = vcvt.s32.f32 %v31
    %vm33 = vcmask 1043456
    %v34 = vsel %vm33, %v32, 0.0
    %35 = vadd.xlane.f32.xlu0 %v34
    %v36 = vpop.xlane.xlu0 %35
    %v37 = vrot.slane %v36, 4
    %v38 = vadd.f32 %v36, %v37
    %v39 = vrot.slane %v38, 2
    %v40 = vadd.f32 %v38, %v39
    %v41 = vrot.slane %v40, 1
    %v42 = vadd.f32 %v40, %v41
    %s43 = vtos %v42
    %v44 = vsub.f32 1.0, %v27
    %v45 = vsub.f32 1.0, %v28
    %v46 = vmul.f32 %v45, %v45
    %v47 = vmul.f32 %v46, %v46
    %v48 = vlog2.pop %v27
    %v49 = vmul.f32 %v48, 0.6931472
    %v50 = vmul.f32 %v44, %v44
    %v51 = vmul.f32 %v49, %v50
    %v52 = vlog2.pop %v44
    %v53 = vmul.f32 %v52, 0.6931472
    %v54 = vmul.f32 %v27, %v27
    %v55 = vmul.f32 %v53, %v54
    %v56 = vmul.f32 %v55, %v47
    %v57 = vsel %vm29, %v51, 0.0
    %v58 = vsel %vm33, %v57, 0.0
    %59 = vadd.xlane.f32.xlu0 %v58
    %v60 = vpop.xlane.xlu0 %59
    %v61 = vrot.slane %v60, 4
    %v62 = vadd.f32 %v60, %v61
    %v63 = vrot.slane %v62, 2
    %v64 = vadd.f32 %v62, %v63
    %v65 = vrot.slane %v64, 1
    %v66 = vadd.f32 %v64, %v65
    %s67 = vtos %v66
    %v68 = vsel %vm30, %v56, 0.0
    %v69 = vsel %vm33, %v68, 0.0
    %70 = vadd.xlane.f32.xlu0 %v69
    %v71 = vpop.xlane.xlu0 %70
    %v72 = vrot.slane %v71, 4
    %v73 = vadd.f32 %v71, %v72
    %v74 = vrot.slane %v73, 2
    %v75 = vadd.f32 %v73, %v74
    %v76 = vrot.slane %v75, 1
    %v77 = vadd.f32 %v75, %v76
    %s78 = vtos %v77
    %v79 = vld [vmem:[%s2] sm:$0xff]
    %v80 = vld [vmem:[%s2 + $0x8] sm:$0xff]
    %v81 = vmax.f32 %v79, %v80
    %v82 = vrot.slane %v81, 4
    %v83 = vmax.f32 %v81, %v82
    %v84 = vrot.slane %v83, 2
    %v85 = vmax.f32 %v83, %v84
    %v86 = vrot.slane %v85, 1
    %v87 = vmax.f32 %v85, %v86
    %v88 = vsub.f32 %v79, %v87
    %v89 = vsub.f32 %v80, %v87
    %v90 = vmul.f32 %v88, 1.442695
    %v91 = vpow.pop %v90
    %v92 = vmul.f32 %v89, 1.442695
    %v93 = vpow.pop %v92
    %v94 = vadd.f32 %v91, %v93
    %v95 = vrot.slane %v94, 4
    %v96 = vadd.f32 %v94, %v95
    %v97 = vrot.slane %v96, 2
    %v98 = vadd.f32 %v96, %v97
    %v99 = vrot.slane %v98, 1
    %v100 = vadd.f32 %v98, %v99
    %v101 = vrcp.pop %v100
    %v102 = vmul.f32 %v91, %v101
    %v103 = vmul.f32 %v93, %v101
    %v104 = vlaneseq
    %v105 = vshrl.u32 %v104, 7
    %v106 = vadd.s32 %v105, 8
    %v107 = vcvt.s32.f32 %v105
    %v108 = vcvt.s32.f32 %v106
    %v109 = vmul.f32 %v107, %v102
    %v110 = vmul.f32 %v108, %v103
    %v111 = vadd.f32 %v109, %v110
    %v112 = vrot.slane %v111, 4
    %v113 = vadd.f32 %v111, %v112
    %v114 = vrot.slane %v113, 2
    %v115 = vadd.f32 %v113, %v114
    %v116 = vrot.slane %v115, 1
    %v117 = vadd.f32 %v115, %v116
    %v118 = vadd.f32 %v117, 0.5
    %v119 = vld [vmem:[%s4] sm:$0x1]
    %v120 = vld [vmem:[%s3] sm:$0x1]
    %v121 = vsub.f32 %v118, %v120
    %v122 = vand.u32 2147483647, %v121
    %v123 = vmul.f32 %v122, %v119
    %vm124 = vcmask 1040384
    %v125 = vsel %vm124, %v123, 0.0
    %126 = vadd.xlane.f32.xlu0 %v125
    %v127 = vpop.xlane.xlu0 %126
    %v128 = vrot.slane %v127, 4
    %v129 = vadd.f32 %v127, %v128
    %v130 = vrot.slane %v129, 2
    %v131 = vadd.f32 %v129, %v130
    %v132 = vrot.slane %v131, 1
    %v133 = vadd.f32 %v131, %v132
    %s134 = vtos %v133
    %v135 = vsel %vm124, %v119, 0.0
    %136 = vadd.xlane.f32.xlu0 %v135
    %v137 = vpop.xlane.xlu0 %136
    %v138 = vrot.slane %v137, 4
    %v139 = vadd.f32 %v137, %v138
    %v140 = vrot.slane %v139, 2
    %v141 = vadd.f32 %v139, %v140
    %v142 = vrot.slane %v141, 1
    %v143 = vadd.f32 %v141, %v142
    %s144 = vtos %v143
    %v145 = vld [vmem:[%s5] sm:$0xf]
    %v146 = vld [vmem:[%s6] sm:$0x1]
    %v147 = vsel %vm33, %v145, -inf
    %v148 = vrot.slane %v147, 4
    %v149 = vmax.f32 %v147, %v148
    %v150 = vrot.slane %v149, 2
    %v151 = vmax.f32 %v149, %v150
    %v152 = vrot.slane %v151, 1
    %v153 = vmax.f32 %v151, %v152
    %v154 = vsub.f32 %v145, %v153
    %v155 = vmul.f32 %v154, 1.442695
    %v156 = vpow.pop %v155
    %v157 = vsel %vm33, %v156, 0.0
    %v158 = vrot.slane %v157, 4
    %v159 = vadd.f32 %v157, %v158
    %v160 = vrot.slane %v159, 2
    %v161 = vadd.f32 %v159, %v160
    %v162 = vrot.slane %v161, 1
    %v163 = vadd.f32 %v161, %v162
    %v164 = vrcp.pop %v163
    %v165 = vmul.f32 %v156, %v164
    %v166 = vsel %vm33, %v165, -inf
    %v167 = vrot.slane %v166, 4
    %v168 = vmax.f32 %v166, %v167
    %v169 = vrot.slane %v168, 2
    %v170 = vmax.f32 %v168, %v169
    %v171 = vrot.slane %v170, 1
    %v172 = vmax.f32 %v170, %v171
    %v173 = vsub.f32 %v165, %v172
    %v174 = vmul.f32 %v173, 1.442695
    %v175 = vpow.pop %v174
    %v176 = vsel %vm33, %v175, 0.0
    %v177 = vrot.slane %v176, 4
    %v178 = vadd.f32 %v176, %v177
    %v179 = vrot.slane %v178, 2
    %v180 = vadd.f32 %v178, %v179
    %v181 = vrot.slane %v180, 1
    %v182 = vadd.f32 %v180, %v181
    %v183 = vlog2.pop %v182
    %v184 = vmul.f32 %v183, 0.6931472
    %v185 = vadd.f32 %v184, %v172
    %v186 = vsub.f32 %v165, %v185
    %v187 = vlaneseq
    %v188 = vshrl.u32 %v187, 7
    %v189 = vsub.s32 0, %v188
    %v190 = vrot.slane %v146, %v189
    %vm191 = vcmp.eq.s32.totalorder %v105, %v190
    %v192 = vsel %vm191, 1, 0
    %v193 = vcvt.s32.f32 %v192
    %v194 = vmul.f32 %v186, %v193
    %v195 = vsel %vm33, %v194, 0.0
    %196 = vadd.xlane.f32.xlu0 %v195
    %v197 = vpop.xlane.xlu0 %196
    %v198 = vrot.slane %v197, 4
    %v199 = vadd.f32 %v197, %v198
    %v200 = vrot.slane %v199, 2
    %v201 = vadd.f32 %v199, %v200
    %v202 = vrot.slane %v201, 1
    %v203 = vadd.f32 %v201, %v202
    %s204 = vtos %v203
    %p205 = scmp.ne.f32.partialorder %s43, 0.0
    %v206 = vrcp.pop 2.0
    %s207 = vtos %v206
    %s208 = smul.f32 %s67, %s207
    %v209 = vrcp.pop 2.0
    %s210 = vtos %v209
    %s211 = smul.f32 %s78, %s210
    %s212 = sadd.f32 %s208, %s211
    %s213 = ssub.f32 0.0, %s212
    %s214 = scalar_select %p205, %s213, 0.0
    %s215 = sadd.f32 %s144, 0.0001
    %v216 = vstv %s215
    %v217 = vrcp.pop %v216
    %s218 = vtos %v217
    %s219 = smul.f32 %s134, %s218
    %s220 = ssub.f32 0.0, %s204
    %v221 = vrcp.pop 32.0
    %s222 = vtos %v221
    %s223 = smul.f32 %s220, %s222
    %s224 = sadd.f32 %s214, %s219
    %s225 = sadd.f32 %s224, %s223
    %s226 = scalar_lea.smem [#allocation2], 0
    %227 = sst [smem:[%s226]] %s225
    // Predicated region
    $region30: #{lane_loss.1} parent=1 // pred_check
      _
    $region31: #{lane_loss.1} parent=1 // pred_check_branch
      %229 = sbr.rel (0) target = $region33
    $region32: #{lane_loss.1} parent=1 // pred_region
      %s231 = ssub.s32 16, 16
      %232 = vsyncadd [#allocation3], %s231
      %235 = dma.smem_to_hbm [#allocation2], 16, %s7, [#allocation3]
    $region33: #{lane_loss.1} parent=1 // pred_fallthru
      _
    // Predicated region
    $region34: #{lane_loss.1} parent=1 // pred_check
      _
    $region35: #{lane_loss.1} parent=1 // pred_check_branch
      %237 = sbr.rel (0) target = $region37
    $region36: #{lane_loss.1} parent=1 // pred_region
      %238 = dma.done [#allocation3], 16
    $region37: #{lane_loss.1} parent=1 // pred_fallthru
      _
    %239 = sfence
    %240 = vsyncpa [#allocation3], 1

</llo_original>
